<compile_context>
chip_gen: v7x
topology: tpu7x:2x2x1
jax: 0.10.0
libtpu: 0.0.40
codegen_flags: <defaults>
</compile_context>

<pallas_src>
import functools

import jax
import jax.numpy as jnp
from jax.experimental import pallas as pl
from jax.experimental.pallas import tpu as pltpu

LANE = 128  # TPU lane width (last dim)


def _round_up(n, m):
    return ((n + m - 1) // m) * m


def _mlp_kernel(x_ref, w1_ref, b1_ref, w2_ref, b2_ref, o_ref):
    # f32 -> bf16 cast of the input tile rides in spare VPU slots.
    x = x_ref[...].astype(jnp.bfloat16)
    # Layer 1: bf16 matmul on the MXU with f32 accumulation.
    h = jnp.dot(x, w1_ref[...], preferred_element_type=jnp.float32)
    # Bias add + ReLU in f32 on the VPU (keep elementwise path f32 for v5e).
    h = jnp.maximum(h + b1_ref[...], 0.0)
    # Layer 2: cast hidden activations to bf16 for the MXU, accumulate in f32.
    y = jnp.dot(h.astype(jnp.bfloat16), w2_ref[...],
                preferred_element_type=jnp.float32)
    o_ref[...] = (y + b2_ref[...]).astype(o_ref.dtype)


def pad_params(w1, b1, w2, b2):
    """One-time init-path prep: pad hidden/out dims to 128 lanes, cast weights
    to bf16. Runs once, outside the per-call forward, so forward never re-reads
    or re-writes parameters in HBM."""
    in_f, hidden = w1.shape
    out_f = w2.shape[1]
    hid_p = _round_up(hidden, LANE)
    out_p = _round_up(out_f, LANE)
    # Zero padding is mathematically inert: padded W1 cols -> zero hidden
    # activations -> zero contribution through padded W2 rows; padded W2 cols
    # only feed output lanes that the wrapper slices off.
    w1p = jnp.zeros((in_f, hid_p), jnp.bfloat16).at[:, :hidden].set(
        w1.astype(jnp.bfloat16))
    w2p = jnp.zeros((hid_p, out_p), jnp.bfloat16).at[:hidden, :out_f].set(
        w2.astype(jnp.bfloat16))
    b1p = jnp.zeros((1, hid_p), jnp.float32).at[0, :hidden].set(
        b1.astype(jnp.float32))
    b2p = jnp.zeros((1, out_p), jnp.float32).at[0, :out_f].set(
        b2.astype(jnp.float32))
    return w1p, b1p, w2p, b2p


@functools.partial(jax.jit, static_argnames=("out_features",))
def module_forward(x, w1p, b1p, w2p, b2p, *, out_features):
    """Pallas implementation of Module.forward -> self.net(X)."""
    batch = x.shape[0]
    x2d = x.reshape(batch, -1)
    in_f = x2d.shape[1]
    hid_p = w1p.shape[1]
    out_p = w2p.shape[1]

    # Batch tile: v7x has 2 TensorCores sharing the "parallel" grid axis, so
    # keep >=2 tiles per core (pipelined x DMA) before growing TB to 128.
    if pl.cdiv(batch, 128) >= 4:
        TB = 128
    elif batch > 64:
        TB = 64
    else:
        TB = _round_up(max(batch, 8), 8)  # tiny batch: single tile
    grid = (pl.cdiv(batch, TB),)

    yp = pl.pallas_call(
        _mlp_kernel,
        out_shape=jax.ShapeDtypeStruct((batch, out_p), jnp.float32),
        grid=grid,
        in_specs=[
            pl.BlockSpec((TB, in_f), lambda i: (i, 0)),      # batch-tiled raw f32 x
            pl.BlockSpec((in_f, hid_p), lambda i: (0, 0)),   # W1 VMEM-resident (bf16)
            pl.BlockSpec((1, hid_p), lambda i: (0, 0)),      # b1 resident (f32)
            pl.BlockSpec((hid_p, out_p), lambda i: (0, 0)),  # W2 VMEM-resident (bf16)
            pl.BlockSpec((1, out_p), lambda i: (0, 0)),      # b2 resident (f32)
        ],
        out_specs=pl.BlockSpec((TB, out_p), lambda i: (i, 0)),
        compiler_params=pltpu.CompilerParams(
            dimension_semantics=("parallel",)),  # v7x: shard tiles across both TCs
    )(x2d, w1p, b1p, w2p, b2p)

    # TODO(synk): if in_features grows too large for a VMEM-resident W1, add a
    # K grid axis ("arbitrary", last) with a pltpu.VMEM f32 accumulator; size
    # the K-split threshold per chip (64 MiB physical VMEM on v7x vs 128 MiB on
    # v5e/v6e) and set pltpu.CompilerParams(vmem_limit_bytes=...) explicitly,
    # budgeting 2x block bytes per input for double buffering.
    return yp[:, :out_features].astype(x.dtype)


def reference_forward(x, w1, b1, w2, b2):
    """Pure-JAX reference mirroring the kernel's bf16-in / f32-accumulate path."""
    x2d = x.reshape(x.shape[0], -1)
    xb = x2d.astype(jnp.bfloat16).astype(jnp.float32)
    w1b = w1.astype(jnp.bfloat16).astype(jnp.float32)
    w2b = w2.astype(jnp.bfloat16).astype(jnp.float32)
    h = jnp.maximum(xb @ w1b + b1.astype(jnp.float32), 0.0)
    hb = h.astype(jnp.bfloat16).astype(jnp.float32)
    return hb @ w2b + b2.astype(jnp.float32)


if __name__ == "__main__":
    # Small, deterministic example: NCHW image batch -> flatten -> MLP.
    batch, channels, spatial = 200, 4, 16          # 200 exercises the ragged-tile path
    in_features = channels * spatial * spatial     # 1024
    hidden, out_features = 64, 10

    key = jax.random.PRNGKey(0)
    kx, kw1, kb1, kw2, kb2 = jax.random.split(key, 5)

    x = jax.random.normal(kx, (batch, channels, spatial, spatial),
                          dtype=jnp.float32)
    # Deterministic synthetic parameters (no checkpoint load); stored (in, out)
    # so the kernel computes x @ W + b, matching nn.Linear's x @ W.T + b.
    w1 = jax.random.normal(kw1, (in_features, hidden), dtype=jnp.float32) * 0.1
    b1 = jax.random.normal(kb1, (hidden,), dtype=jnp.float32) * 0.01
    w2 = jax.random.normal(kw2, (hidden, out_features), dtype=jnp.float32) * 0.1
    b2 = jax.random.normal(kb2, (out_features,), dtype=jnp.float32) * 0.01

    # One-time parameter prep (outside the per-call forward path).
    w1p, b1p, w2p, b2p = pad_params(w1, b1, w2, b2)
    jax.block_until_ready((w1p, b1p, w2p, b2p))

    y = module_forward(x, w1p, b1p, w2p, b2p, out_features=out_features)
    jax.block_until_ready(y)

    y_ref = reference_forward(x, w1, b1, w2, b2)
    assert y.shape == (batch, out_features)
    assert jnp.allclose(y, y_ref, atol=1e-2, rtol=1e-2), (
        float(jnp.max(jnp.abs(y - y_ref))))

    # TODO(synk): plotting / training_step / validation_step / optimizer parts
    # of the d2l Module are host-side utilities with no kernel equivalent;
    # only forward() is implemented here.
    print("KERNEL_OK")
</pallas_src>

<mosaic_0001>
module attributes {stable_mosaic.version = 11 : i64} {
  func.func @_mlp_kernel(%arg0: i32, %arg1: memref<64x1024xf32, #tpu.memory_space<vmem>>, %arg2: memref<1024x128xbf16, #tpu.memory_space<vmem>>, %arg3: memref<1x128xf32, #tpu.memory_space<vmem>>, %arg4: memref<128x128xbf16, #tpu.memory_space<vmem>>, %arg5: memref<1x128xf32, #tpu.memory_space<vmem>>, %arg6: memref<64x128xf32, #tpu.memory_space<vmem>>) attributes {dimension_semantics = [#tpu.dimension_semantics<parallel>], iteration_bounds = array<i64: 4>, scalar_prefetch = 0 : i64, scratch_operands = 0 : i64, tpu.core_type = #tpu.core_type<tc>, window_params = [{transform_indices = @transform_0, window_bounds = array<i64: 64, 1024>}, {pipeline_mode = #tpu.pipeline_mode<synchronous>, transform_indices = @transform_1, window_bounds = array<i64: 1024, 128>}, {pipeline_mode = #tpu.pipeline_mode<synchronous>, transform_indices = @transform_2, window_bounds = array<i64: 1, 128>}, {pipeline_mode = #tpu.pipeline_mode<synchronous>, transform_indices = @transform_3, window_bounds = array<i64: 128, 128>}, {pipeline_mode = #tpu.pipeline_mode<synchronous>, transform_indices = @transform_4, window_bounds = array<i64: 1, 128>}, {transform_indices = @transform_5, window_bounds = array<i64: 64, 128>}]} {
    %c0 = arith.constant 0 : index
    %c0_0 = arith.constant 0 : index
    %0 = vector.load %arg1[%c0, %c0_0] : memref<64x1024xf32, #tpu.memory_space<vmem>>, vector<64x1024xf32>
    %1 = arith.truncf %0 : vector<64x1024xf32> to vector<64x1024xbf16>
    %c0_1 = arith.constant 0 : index
    %c0_2 = arith.constant 0 : index
    %2 = vector.load %arg2[%c0_1, %c0_2] : memref<1024x128xbf16, #tpu.memory_space<vmem>>, vector<1024x128xbf16>
    %cst = arith.constant dense<0.000000e+00> : vector<64x128xf32>
    %3 = tpu.matmul %1, %2, %cst {dimension_numbers = #tpu.dot_dimension_numbers<[1], [0], [0], [1], [0, 0, 1, 1], [], []>} : vector<64x1024xbf16>, vector<1024x128xbf16>, vector<64x128xf32> -> vector<64x128xf32>
    %c0_3 = arith.constant 0 : index
    %c0_4 = arith.constant 0 : index
    %4 = vector.load %arg3[%c0_3, %c0_4] : memref<1x128xf32, #tpu.memory_space<vmem>>, vector<1x128xf32>
    %5 = vector.broadcast %4 : vector<1x128xf32> to vector<64x128xf32>
    %6 = arith.addf %3, %5 : vector<64x128xf32>
    %cst_5 = arith.constant 0.000000e+00 : f32
    %7 = vector.broadcast %cst_5 : f32 to vector<64x128xf32>
    %8 = arith.maximumf %6, %7 : vector<64x128xf32>
    %9 = arith.truncf %8 : vector<64x128xf32> to vector<64x128xbf16>
    %c0_6 = arith.constant 0 : index
    %c0_7 = arith.constant 0 : index
    %10 = vector.load %arg4[%c0_6, %c0_7] : memref<128x128xbf16, #tpu.memory_space<vmem>>, vector<128x128xbf16>
    %cst_8 = arith.constant dense<0.000000e+00> : vector<64x128xf32>
    %11 = tpu.matmul %9, %10, %cst_8 {dimension_numbers = #tpu.dot_dimension_numbers<[1], [0], [0], [1], [0, 0, 1, 1], [], []>} : vector<64x128xbf16>, vector<128x128xbf16>, vector<64x128xf32> -> vector<64x128xf32>
    %c0_9 = arith.constant 0 : index
    %c0_10 = arith.constant 0 : index
    %12 = vector.load %arg5[%c0_9, %c0_10] : memref<1x128xf32, #tpu.memory_space<vmem>>, vector<1x128xf32>
    %13 = vector.broadcast %12 : vector<1x128xf32> to vector<64x128xf32>
    %14 = arith.addf %11, %13 : vector<64x128xf32>
    %c0_11 = arith.constant 0 : index
    %c0_12 = arith.constant 0 : index
    %15 = vector.load %arg6[%c0_11, %c0_12] : memref<64x128xf32, #tpu.memory_space<vmem>>, vector<64x128xf32>
    tpu.vector_store %arg6[%c0_11, %c0_12], %14 {strides = array<i32>} : memref<64x128xf32, #tpu.memory_space<vmem>>, vector<64x128xf32>,
    return
  }
  func.func @transform_0(%arg0: i32) -> (i32, i32) {
    %c0_i32 = arith.constant 0 : i32
    %c0_i32_0 = arith.constant 0 : i32
    return %arg0, %c0_i32 : i32, i32
  }
  func.func @transform_1(%arg0: i32) -> (i32, i32) {
    %c0_i32 = arith.constant 0 : i32
    %c0_i32_0 = arith.constant 0 : i32
    %c0_i32_1 = arith.constant 0 : i32
    return %c0_i32, %c0_i32_0 : i32, i32
  }
  func.func @transform_2(%arg0: i32) -> (i32, i32) {
    %c0_i32 = arith.constant 0 : i32
    %c0_i32_0 = arith.constant 0 : i32
    %c0_i32_1 = arith.constant 0 : i32
    return %c0_i32, %c0_i32_0 : i32, i32
  }
  func.func @transform_3(%arg0: i32) -> (i32, i32) {
    %c0_i32 = arith.constant 0 : i32
    %c0_i32_0 = arith.constant 0 : i32
    %c0_i32_1 = arith.constant 0 : i32
    return %c0_i32, %c0_i32_0 : i32, i32
  }
  func.func @transform_4(%arg0: i32) -> (i32, i32) {
    %c0_i32 = arith.constant 0 : i32
    %c0_i32_0 = arith.constant 0 : i32
    %c0_i32_1 = arith.constant 0 : i32
    return %c0_i32, %c0_i32_0 : i32, i32
  }
  func.func @transform_5(%arg0: i32) -> (i32, i32) {
    %c0_i32 = arith.constant 0 : i32
    %c0_i32_0 = arith.constant 0 : i32
    return %arg0, %c0_i32 : i32, i32
  }
}

</mosaic_0001>

<llo_original>
// kernel: module_forward.1
$region0: #{module_forward.1}
  #allocation0 [shape = 'u32[]', space=smem, size = 0x4, offset = 0x4, fixed_abs, tag = 'smem constant byte address 0x4 - core index']
  #allocation1 [shape = 'u32[144,128]{1,0:T(1,128)}', space=vmem, size = 0x12000, scoped, tag = 'internal scratch']
  %s0 = inlined_call_operand.vmem [shape: f32[200,1024], index: 0, kind: input, shape index: {}]
  %s1 = inlined_call_operand.vmem [shape: bf16[1024,128], index: 1, kind: input, shape index: {}]
  %s2 = inlined_call_operand.vmem [shape: f32[1,128], index: 2, kind: input, shape index: {}]
  %s3 = inlined_call_operand.vmem [shape: bf16[128,128], index: 3, kind: input, shape index: {}]
  %s4 = inlined_call_operand.vmem [shape: f32[1,128], index: 4, kind: input, shape index: {}]
  %s5 = inlined_call_operand.vmem [shape: f32[200,128], index: 5, kind: output, shape index: {}]
  %s6 = sld [smem:[#allocation0]]
  $region101: #{module_forward.1} parent=0
    _
  %s8 = ssub.s32 1, %s6
  %s9 = scalar_select 0, %s8, %s6
  $region1: #{module_forward.1} parent=0
    #allocation2 [shape = 'u8[65536]{0}', space=vmem, size = 0x10000, scoped, tag = 'output window, operand 0']
    loop: start=0, step=1, limit=6
    $region2: #{module_forward.1} parent=1 // loop_pre_header
      _
    $region3: #{module_forward.1} parent=1 // loop_header
      %s11 = sphi 0, %s15
      %p12 = scmp.ge.s32.totalorder %s11, 6
      %s21 = sphi 0, %s23
      %s24 = sphi 0, %s21
      %s25 = sphi 0, %s24
      %s41 = sphi 0, %s25
      %s45 = sphi 0, %s45
      %s47 = sphi 0, %s45
      %s48 = sphi 0, %s47
      %s62 = sphi 0, %s48
      %s66 = sphi 0, %s66
      %s68 = sphi 0, %s66
      %s69 = sphi 0, %s68
      %s83 = sphi 0, %s69
      %s87 = sphi 0, %s87
      %s89 = sphi 0, %s87
      %s90 = sphi 0, %s89
      %s104 = sphi 0, %s90
      %s108 = sphi 0, %s108
      %s110 = sphi 0, %s108
      %s111 = sphi 0, %s110
      %s125 = sphi 0, %s111
      %s131 = sphi 0, %s133
      %s134 = sphi 0, %s131
      %s135 = sphi 0, %s134
      %s151 = sphi 0, %s135
    $region4: #{module_forward.1} parent=1 // loop_header_branch
      %14 = sbr.rel (%p12) target = $region8
    $region5: #{module_forward.1} parent=1 // loop_body
      %s16 = ssub.s32 %s11, 1
      %s17 = ssub.s32 %s11, 2
      %s18 = sadd.s32 %s11, 1
      %s19 = ssub.s32 %s11, %s18
      %p20 = scmp.eq.s32.totalorder %s19, 0
      %s22 = sadd.s32 %s21, 1
      %s23 = scalar_select %p20, %s21, %s22
      %p26 = pneg %p20
      %p27 = scmp.eq.s32.totalorder %s11, 3
      %p28 = por %p26, %p27
      %p29 = scmp.ne.s32.totalorder %s21, %s24
      %p30 = scmp.eq.s32.totalorder %s11, 0
      %p31 = por %p29, %p30
      %p32 = scmp.ne.s32.totalorder %s21, %s24
      %p33 = scmp.eq.s32.totalorder %s16, 3
      %p34 = por %p32, %p33
      %p35 = scmp.ne.s32.totalorder %s24, %s25
      %p36 = scmp.eq.s32.totalorder %s16, 0
      %p37 = por %p35, %p36
      %p38 = scmp.ne.s32.totalorder %s24, %s25
      %p39 = scmp.eq.s32.totalorder %s17, 3
      %p40 = por %p38, %p39
      %p42 = scmp.ne.s32.totalorder %s25, %s41
      %p43 = scmp.eq.s32.totalorder %s17, 0
      %p44 = por %p42, %p43
      %s46 = sadd.s32 %s45, 1
      %p49 = scmp.eq.s32.totalorder %s11, 3
      %p50 = scmp.ne.s32.totalorder %s45, %s47
      %p51 = scmp.eq.s32.totalorder %s11, 0
      %p52 = por %p50, %p51
      %p53 = scmp.ne.s32.totalorder %s45, %s47
      %p54 = scmp.eq.s32.totalorder %s16, 3
      %p55 = por %p53, %p54
      %p56 = scmp.ne.s32.totalorder %s47, %s48
      %p57 = scmp.eq.s32.totalorder %s16, 0
      %p58 = por %p56, %p57
      %p59 = scmp.ne.s32.totalorder %s47, %s48
      %p60 = scmp.eq.s32.totalorder %s17, 3
      %p61 = por %p59, %p60
      %p63 = scmp.ne.s32.totalorder %s48, %s62
      %p64 = scmp.eq.s32.totalorder %s17, 0
      %p65 = por %p63, %p64
      %s67 = sadd.s32 %s66, 1
      %p70 = scmp.eq.s32.totalorder %s11, 3
      %p71 = scmp.ne.s32.totalorder %s66, %s68
      %p72 = scmp.eq.s32.totalorder %s11, 0
      %p73 = por %p71, %p72
      %p74 = scmp.ne.s32.totalorder %s66, %s68
      %p75 = scmp.eq.s32.totalorder %s16, 3
      %p76 = por %p74, %p75
      %p77 = scmp.ne.s32.totalorder %s68, %s69
      %p78 = scmp.eq.s32.totalorder %s16, 0
      %p79 = por %p77, %p78
      %p80 = scmp.ne.s32.totalorder %s68, %s69
      %p81 = scmp.eq.s32.totalorder %s17, 3
      %p82 = por %p80, %p81
      %p84 = scmp.ne.s32.totalorder %s69, %s83
      %p85 = scmp.eq.s32.totalorder %s17, 0
      %p86 = por %p84, %p85
      %s88 = sadd.s32 %s87, 1
      %p91 = scmp.eq.s32.totalorder %s11, 3
      %p92 = scmp.ne.s32.totalorder %s87, %s89
      %p93 = scmp.eq.s32.totalorder %s11, 0
      %p94 = por %p92, %p93
      %p95 = scmp.ne.s32.totalorder %s87, %s89
      %p96 = scmp.eq.s32.totalorder %s16, 3
      %p97 = por %p95, %p96
      %p98 = scmp.ne.s32.totalorder %s89, %s90
      %p99 = scmp.eq.s32.totalorder %s16, 0
      %p100 = por %p98, %p99
      %p101 = scmp.ne.s32.totalorder %s89, %s90
      %p102 = scmp.eq.s32.totalorder %s17, 3
      %p103 = por %p101, %p102
      %p105 = scmp.ne.s32.totalorder %s90, %s104
      %p106 = scmp.eq.s32.totalorder %s17, 0
      %p107 = por %p105, %p106
      %s109 = sadd.s32 %s108, 1
      %p112 = scmp.eq.s32.totalorder %s11, 3
      %p113 = scmp.ne.s32.totalorder %s108, %s110
      %p114 = scmp.eq.s32.totalorder %s11, 0
      %p115 = por %p113, %p114
      %p116 = scmp.ne.s32.totalorder %s108, %s110
      %p117 = scmp.eq.s32.totalorder %s16, 3
      %p118 = por %p116, %p117
      %p119 = scmp.ne.s32.totalorder %s110, %s111
      %p120 = scmp.eq.s32.totalorder %s16, 0
      %p121 = por %p119, %p120
      %p122 = scmp.ne.s32.totalorder %s110, %s111
      %p123 = scmp.eq.s32.totalorder %s17, 3
      %p124 = por %p122, %p123
      %p126 = scmp.ne.s32.totalorder %s111, %s125
      %p127 = scmp.eq.s32.totalorder %s17, 0
      %p128 = por %p126, %p127
      %s129 = ssub.s32 %s11, %s18
      %p130 = scmp.eq.s32.totalorder %s129, 0
      %s132 = sadd.s32 %s131, 1
      %s133 = scalar_select %p130, %s131, %s132
      %p136 = pneg %p130
      %p137 = scmp.eq.s32.totalorder %s11, 3
      %p138 = por %p136, %p137
      %p139 = scmp.ne.s32.totalorder %s131, %s134
      %p140 = scmp.eq.s32.totalorder %s11, 0
      %p141 = por %p139, %p140
      %p142 = scmp.ne.s32.totalorder %s131, %s134
      %p143 = scmp.eq.s32.totalorder %s16, 3
      %p144 = por %p142, %p143
      %p145 = scmp.ne.s32.totalorder %s134, %s135
      %p146 = scmp.eq.s32.totalorder %s16, 0
      %p147 = por %p145, %p146
      %p148 = scmp.ne.s32.totalorder %s134, %s135
      %p149 = scmp.eq.s32.totalorder %s17, 3
      %p150 = por %p148, %p149
      %p152 = scmp.ne.s32.totalorder %s135, %s151
      %p153 = scmp.eq.s32.totalorder %s17, 0
      %p154 = por %p152, %p153
      %p155 = scmp.le.s32.totalorder 1, %s11
      %p156 = scmp.lt.s32.totalorder %s11, 5
      %p157 = pnand %p155, %p156
      %p158 = pneg %p157
      // Predicated region
      $region9: #{module_forward.1} parent=5 // pred_check
        _
      $region10: #{module_forward.1} parent=5 // pred_check_branch
        %160 = sbr.rel (%p157) target = $region12
      $region11: #{module_forward.1} parent=5 // pred_region
        %s161 = ssub.s32 %s11, 1
        // Predicated region
        $region13: #{module_forward.1} parent=11 // pred_check
          %p162 = pneg %p58
        $region14: #{module_forward.1} parent=11 // pred_check_branch
          %164 = sbr.rel (%p162) target = $region16
        $region15: #{module_forward.1} parent=11 // pred_region
          _
        $region16: #{module_forward.1} parent=11 // pred_fallthru
          _
        // Predicated region
        $region17: #{module_forward.1} parent=11 // pred_check
          %p165 = pneg %p79
        $region18: #{module_forward.1} parent=11 // pred_check_branch
          %167 = sbr.rel (%p165) target = $region20
        $region19: #{module_forward.1} parent=11 // pred_region
          _
        $region20: #{module_forward.1} parent=11 // pred_fallthru
          _
        // Predicated region
        $region21: #{module_forward.1} parent=11 // pred_check
          %p168 = pneg %p100
        $region22: #{module_forward.1} parent=11 // pred_check_branch
          %170 = sbr.rel (%p168) target = $region24
        $region23: #{module_forward.1} parent=11 // pred_region
          _
        $region24: #{module_forward.1} parent=11 // pred_fallthru
          _
        // Predicated region
        $region25: #{module_forward.1} parent=11 // pred_check
          %p171 = pneg %p121
        $region26: #{module_forward.1} parent=11 // pred_check_branch
          %173 = sbr.rel (%p171) target = $region28
        $region27: #{module_forward.1} parent=11 // pred_region
          _
        $region28: #{module_forward.1} parent=11 // pred_fallthru
          _
      $region12: #{module_forward.1} parent=5 // pred_fallthru
        _
      %p174 = scmp.lt.s32.totalorder %s11, 4
      // Predicated region
      $region29: #{module_forward.1} parent=5 // pred_check
        %p175 = pneg %p174
      $region30: #{module_forward.1} parent=5 // pred_check_branch
        %177 = sbr.rel (%p175) target = $region32
      $region31: #{module_forward.1} parent=5 // pred_region
        // Predicated region
        $region33: #{module_forward.1} parent=31 // pred_check
          %p178 = pneg %p31
        $region34: #{module_forward.1} parent=31 // pred_check_branch
          %180 = sbr.rel (%p178) target = $region36
        $region35: #{module_forward.1} parent=31 // pred_region
          %s181 = smul.u32 8, %s11
          %s182 = ssub.s32 25, %s181
          %p183 = scmp.lt.s32.totalorder %s182, 8
          %s184 = scalar_select %p183, %s182, 8
          %s185 = smul.u32 128, %s184
          %s186 = smul.u32 %s185, 8
          %p187 = scmp.lt.s32.totalorder %s181, 24
          %s188 = scalar_select %p187, %s181, 24
          %s189 = smul.addr %s188, 8
          %s190 = smul.addr %s189, 8
          %s191 = scalar_lea.vmem %s0, %s190
          %s192 = smul.u32 8, %s11
          %s193 = ssub.s32 25, %s192
          %p194 = scmp.lt.s32.totalorder %s193, 8
          %s195 = scalar_select %p194, %s193, 8
          %s196 = smul.u32 128, %s195
          %s197 = smul.u32 %s196, 8
        $region36: #{module_forward.1} parent=31 // pred_fallthru
          _
      $region32: #{module_forward.1} parent=5 // pred_fallthru
        _
      %p198 = scmp.le.s32.totalorder 1, %s11
      %p199 = scmp.lt.s32.totalorder %s11, 5
      %p200 = pnand %p198, %p199
      %p201 = pneg %p200
      // Predicated region
      $region37: #{module_forward.1} parent=5 // pred_check
        _
      $region38: #{module_forward.1} parent=5 // pred_check_branch
        %203 = sbr.rel (%p200) target = $region40
      $region39: #{module_forward.1} parent=5 // pred_region
        %s204 = ssub.s32 %s11, 1
        %s205 = smul.u32 8, %s16
        %s206 = ssub.s32 25, %s205
        %p207 = scmp.lt.s32.totalorder %s206, 8
        %s208 = scalar_select %p207, %s206, 8
        %s209 = smul.u32 128, %s208
        %s210 = smul.u32 %s209, 8
        %p211 = scmp.lt.s32.totalorder %s205, 24
        %s212 = scalar_select %p211, %s205, 24
        %s213 = smul.addr %s212, 8
        %s214 = smul.addr %s213, 8
        %s215 = scalar_lea.vmem %s0, %s214
        %p216 = pneg %p37
        %p217 = pneg %p34
        %p218 = pneg %p58
        %p219 = pneg %p55
        %p220 = pneg %p79
        %p221 = pneg %p76
        %p222 = pneg %p100
        %p223 = pneg %p97
        %p224 = pneg %p121
        %p225 = pneg %p118
        %p226 = pneg %p147
        %p227 = pneg %p144
        %s228 = sand.u32 %s134, 1
        %s229 = sand.u32 %s134, 1
        %s230 = smul.addr %s229, 64
        %s231 = scalar_lea.vmem [#allocation2], %s230
        %s232 = smul.u32 8, %s16
        %s233 = ssub.s32 25, %s232
        %p234 = scmp.lt.s32.totalorder %s233, 8
        %s235 = scalar_select %p234, %s233, 8
        %s236 = smul.u32 128, %s235
        %s237 = smul.u32 %s236, 8
        %p238 = scmp.lt.s32.totalorder %s232, 24
        %s239 = scalar_select %p238, %s232, 24
        %s240 = smul.addr %s239, 8
        %s241 = smul.addr %s240, 8
        %s242 = scalar_lea.vmem %s0, %s241
        %s243 = smul.u32 8, %s16
        %s244 = ssub.s32 25, %s243
        %p245 = scmp.lt.s32.totalorder %s244, 8
        %s246 = scalar_select %p245, %s244, 8
        %s247 = smul.u32 128, %s246
        %s248 = smul.u32 %s247, 8
        %s249 = smul.u32 8, %s16
        %s250 = ssub.s32 25, %s249
        %p251 = scmp.lt.s32.totalorder %s250, 8
        %s252 = scalar_select %p251, %s250, 8
        %s253 = smul.u32 128, %s252
        %v255 = vld [vmem:[%s242] sm:$0xff]
        %v256 = vld [vmem:[%s242 + $0x8] sm:$0xff]
        %v257 = vld [vmem:[%s242 + $0x10] sm:$0xff]
        %v258 = vld [vmem:[%s242 + $0x18] sm:$0xff]
        %v259 = vld [vmem:[%s242 + $0x20] sm:$0xff]
        %v260 = vld [vmem:[%s242 + $0x28] sm:$0xff]
        %v261 = vld [vmem:[%s242 + $0x30] sm:$0xff]
        %v262 = vld [vmem:[%s242 + $0x38] sm:$0xff]
        %v263 = vld [vmem:[%s242 + $0x40] sm:$0xff]
        %v264 = vld [vmem:[%s242 + $0x48] sm:$0xff]
        %v265 = vld [vmem:[%s242 + $0x50] sm:$0xff]
        %v266 = vld [vmem:[%s242 + $0x58] sm:$0xff]
        %v267 = vld [vmem:[%s242 + $0x60] sm:$0xff]
        %v268 = vld [vmem:[%s242 + $0x68] sm:$0xff]
        %v269 = vld [vmem:[%s242 + $0x70] sm:$0xff]
        %v270 = vld [vmem:[%s242 + $0x78] sm:$0xff]
        %v271 = vld [vmem:[%s242 + $0x80] sm:$0xff]
        %v272 = vld [vmem:[%s242 + $0x88] sm:$0xff]
        %v273 = vld [vmem:[%s242 + $0x90] sm:$0xff]
        %v274 = vld [vmem:[%s242 + $0x98] sm:$0xff]
        %v275 = vld [vmem:[%s242 + $0xa0] sm:$0xff]
        %v276 = vld [vmem:[%s242 + $0xa8] sm:$0xff]
        %v277 = vld [vmem:[%s242 + $0xb0] sm:$0xff]
        %v278 = vld [vmem:[%s242 + $0xb8] sm:$0xff]
        %v279 = vld [vmem:[%s242 + $0xc0] sm:$0xff]
        %v280 = vld [vmem:[%s242 + $0xc8] sm:$0xff]
        %v281 = vld [vmem:[%s242 + $0xd0] sm:$0xff]
        %v282 = vld [vmem:[%s242 + $0xd8] sm:$0xff]
        %v283 = vld [vmem:[%s242 + $0xe0] sm:$0xff]
        %v284 = vld [vmem:[%s242 + $0xe8] sm:$0xff]
        %v285 = vld [vmem:[%s242 + $0xf0] sm:$0xff]
        %v286 = vld [vmem:[%s242 + $0xf8] sm:$0xff]
        %v287 = vld [vmem:[%s242 + $0x100] sm:$0xff]
        %v288 = vld [vmem:[%s242 + $0x108] sm:$0xff]
        %v289 = vld [vmem:[%s242 + $0x110] sm:$0xff]
        %v290 = vld [vmem:[%s242 + $0x118] sm:$0xff]
        %v291 = vld [vmem:[%s242 + $0x120] sm:$0xff]
        %v292 = vld [vmem:[%s242 + $0x128] sm:$0xff]
        %v293 = vld [vmem:[%s242 + $0x130] sm:$0xff]
        %v294 = vld [vmem:[%s242 + $0x138] sm:$0xff]
        %v295 = vld [vmem:[%s242 + $0x140] sm:$0xff]
        %v296 = vld [vmem:[%s242 + $0x148] sm:$0xff]
        %v297 = vld [vmem:[%s242 + $0x150] sm:$0xff]
        %v298 = vld [vmem:[%s242 + $0x158] sm:$0xff]
        %v299 = vld [vmem:[%s242 + $0x160] sm:$0xff]
        %v300 = vld [vmem:[%s242 + $0x168] sm:$0xff]
        %v301 = vld [vmem:[%s242 + $0x170] sm:$0xff]
        %v302 = vld [vmem:[%s242 + $0x178] sm:$0xff]
        %v303 = vld [vmem:[%s242 + $0x180] sm:$0xff]
        %v304 = vld [vmem:[%s242 + $0x188] sm:$0xff]
        %v305 = vld [vmem:[%s242 + $0x190] sm:$0xff]
        %v306 = vld [vmem:[%s242 + $0x198] sm:$0xff]
        %v307 = vld [vmem:[%s242 + $0x1a0] sm:$0xff]
        %v308 = vld [vmem:[%s242 + $0x1a8] sm:$0xff]
        %v309 = vld [vmem:[%s242 + $0x1b0] sm:$0xff]
        %v310 = vld [vmem:[%s242 + $0x1b8] sm:$0xff]
        %v311 = vld [vmem:[%s242 + $0x1c0] sm:$0xff]
        %v312 = vld [vmem:[%s242 + $0x1c8] sm:$0xff]
        %v313 = vld [vmem:[%s242 + $0x1d0] sm:$0xff]
        %v314 = vld [vmem:[%s242 + $0x1d8] sm:$0xff]
        %v315 = vld [vmem:[%s242 + $0x1e0] sm:$0xff]
        %v316 = vld [vmem:[%s242 + $0x1e8] sm:$0xff]
        %v317 = vld [vmem:[%s242 + $0x1f0] sm:$0xff]
        %v318 = vld [vmem:[%s242 + $0x1f8] sm:$0xff]
        %v319 = vpack.c.bf16 %v263, %v255
        %v320 = vpack.c.bf16 %v264, %v256
        %v321 = vpack.c.bf16 %v265, %v257
        %v322 = vpack.c.bf16 %v266, %v258
        %v323 = vpack.c.bf16 %v267, %v259
        %v324 = vpack.c.bf16 %v268, %v260
        %v325 = vpack.c.bf16 %v269, %v261
        %v326 = vpack.c.bf16 %v270, %v262
        %v327 = vpack.c.bf16 %v279, %v271
        %v328 = vpack.c.bf16 %v280, %v272
        %v329 = vpack.c.bf16 %v281, %v273
        %v330 = vpack.c.bf16 %v282, %v274
        %v331 = vpack.c.bf16 %v283, %v275
        %v332 = vpack.c.bf16 %v284, %v276
        %v333 = vpack.c.bf16 %v285, %v277
        %v334 = vpack.c.bf16 %v286, %v278
        %v335 = vpack.c.bf16 %v295, %v287
        %v336 = vpack.c.bf16 %v296, %v288
        %v337 = vpack.c.bf16 %v297, %v289
        %v338 = vpack.c.bf16 %v298, %v290
        %v339 = vpack.c.bf16 %v299, %v291
        %v340 = vpack.c.bf16 %v300, %v292
        %v341 = vpack.c.bf16 %v301, %v293
        %v342 = vpack.c.bf16 %v302, %v294
        %v343 = vpack.c.bf16 %v311, %v303
        %v344 = vpack.c.bf16 %v312, %v304
        %v345 = vpack.c.bf16 %v313, %v305
        %v346 = vpack.c.bf16 %v314, %v306
        %v347 = vpack.c.bf16 %v315, %v307
        %v348 = vpack.c.bf16 %v316, %v308
        %v349 = vpack.c.bf16 %v317, %v309
        %v350 = vpack.c.bf16 %v318, %v310
        %v351 = vld [vmem:[%s1] sm:$0xf]
        %v352 = vld [vmem:[%s1 + $0x4] sm:$0xf]
        %v353 = vld [vmem:[%s1 + $0x8] sm:$0xf]
        %v354 = vld [vmem:[%s1 + $0xc] sm:$0xf]
        %v355 = vld [vmem:[%s1 + $0x10] sm:$0xf]
        %v356 = vld [vmem:[%s1 + $0x14] sm:$0xf]
        %v357 = vld [vmem:[%s1 + $0x18] sm:$0xf]
        %v358 = vld [vmem:[%s1 + $0x1c] sm:$0xf]
        %v359 = vld [vmem:[%s1 + $0x20] sm:$0xf]
        %v360 = vld [vmem:[%s1 + $0x24] sm:$0xf]
        %v361 = vld [vmem:[%s1 + $0x28] sm:$0xf]
        %v362 = vld [vmem:[%s1 + $0x2c] sm:$0xf]
        %v363 = vld [vmem:[%s1 + $0x30] sm:$0xf]
        %v364 = vld [vmem:[%s1 + $0x34] sm:$0xf]
        %v365 = vld [vmem:[%s1 + $0x38] sm:$0xf]
        %v366 = vld [vmem:[%s1 + $0x3c] sm:$0xf]
        %v367 = vld [vmem:[%s1 + $0x40] sm:$0xf]
        %v368 = vld [vmem:[%s1 + $0x44] sm:$0xf]
        %v369 = vld [vmem:[%s1 + $0x48] sm:$0xf]
        %v370 = vld [vmem:[%s1 + $0x4c] sm:$0xf]
        %v371 = vld [vmem:[%s1 + $0x50] sm:$0xf]
        %v372 = vld [vmem:[%s1 + $0x54] sm:$0xf]
        %v373 = vld [vmem:[%s1 + $0x58] sm:$0xf]
        %v374 = vld [vmem:[%s1 + $0x5c] sm:$0xf]
        %v375 = vld [vmem:[%s1 + $0x60] sm:$0xf]
        %v376 = vld [vmem:[%s1 + $0x64] sm:$0xf]
        %v377 = vld [vmem:[%s1 + $0x68] sm:$0xf]
        %v378 = vld [vmem:[%s1 + $0x6c] sm:$0xf]
        %v379 = vld [vmem:[%s1 + $0x70] sm:$0xf]
        %v380 = vld [vmem:[%s1 + $0x74] sm:$0xf]
        %v381 = vld [vmem:[%s1 + $0x78] sm:$0xf]
        %v382 = vld [vmem:[%s1 + $0x7c] sm:$0xf]
        %v383 = vld [vmem:[%s1 + $0x80] sm:$0xf]
        %v384 = vld [vmem:[%s1 + $0x84] sm:$0xf]
        %v385 = vld [vmem:[%s1 + $0x88] sm:$0xf]
        %v386 = vld [vmem:[%s1 + $0x8c] sm:$0xf]
        %v387 = vld [vmem:[%s1 + $0x90] sm:$0xf]
        %v388 = vld [vmem:[%s1 + $0x94] sm:$0xf]
        %v389 = vld [vmem:[%s1 + $0x98] sm:$0xf]
        %v390 = vld [vmem:[%s1 + $0x9c] sm:$0xf]
        %v391 = vld [vmem:[%s1 + $0xa0] sm:$0xf]
        %v392 = vld [vmem:[%s1 + $0xa4] sm:$0xf]
        %v393 = vld [vmem:[%s1 + $0xa8] sm:$0xf]
        %v394 = vld [vmem:[%s1 + $0xac] sm:$0xf]
        %v395 = vld [vmem:[%s1 + $0xb0] sm:$0xf]
        %v396 = vld [vmem:[%s1 + $0xb4] sm:$0xf]
        %v397 = vld [vmem:[%s1 + $0xb8] sm:$0xf]
        %v398 = vld [vmem:[%s1 + $0xbc] sm:$0xf]
        %v399 = vld [vmem:[%s1 + $0xc0] sm:$0xf]
        %v400 = vld [vmem:[%s1 + $0xc4] sm:$0xf]
        %v401 = vld [vmem:[%s1 + $0xc8] sm:$0xf]
        %v402 = vld [vmem:[%s1 + $0xcc] sm:$0xf]
        %v403 = vld [vmem:[%s1 + $0xd0] sm:$0xf]
        %v404 = vld [vmem:[%s1 + $0xd4] sm:$0xf]
        %v405 = vld [vmem:[%s1 + $0xd8] sm:$0xf]
        %v406 = vld [vmem:[%s1 + $0xdc] sm:$0xf]
        %v407 = vld [vmem:[%s1 + $0xe0] sm:$0xf]
        %v408 = vld [vmem:[%s1 + $0xe4] sm:$0xf]
        %v409 = vld [vmem:[%s1 + $0xe8] sm:$0xf]
        %v410 = vld [vmem:[%s1 + $0xec] sm:$0xf]
        %v411 = vld [vmem:[%s1 + $0xf0] sm:$0xf]
        %v412 = vld [vmem:[%s1 + $0xf4] sm:$0xf]
        %v413 = vld [vmem:[%s1 + $0xf8] sm:$0xf]
        %v414 = vld [vmem:[%s1 + $0xfc] sm:$0xf]
        %v415 = vld [vmem:[%s1 + $0x100] sm:$0xf]
        %v416 = vld [vmem:[%s1 + $0x104] sm:$0xf]
        %v417 = vld [vmem:[%s1 + $0x108] sm:$0xf]
        %v418 = vld [vmem:[%s1 + $0x10c] sm:$0xf]
        %v419 = vld [vmem:[%s1 + $0x110] sm:$0xf]
        %v420 = vld [vmem:[%s1 + $0x114] sm:$0xf]
        %v421 = vld [vmem:[%s1 + $0x118] sm:$0xf]
        %v422 = vld [vmem:[%s1 + $0x11c] sm:$0xf]
        %v423 = vld [vmem:[%s1 + $0x120] sm:$0xf]
        %v424 = vld [vmem:[%s1 + $0x124] sm:$0xf]
        %v425 = vld [vmem:[%s1 + $0x128] sm:$0xf]
        %v426 = vld [vmem:[%s1 + $0x12c] sm:$0xf]
        %v427 = vld [vmem:[%s1 + $0x130] sm:$0xf]
        %v428 = vld [vmem:[%s1 + $0x134] sm:$0xf]
        %v429 = vld [vmem:[%s1 + $0x138] sm:$0xf]
        %v430 = vld [vmem:[%s1 + $0x13c] sm:$0xf]
        %v431 = vld [vmem:[%s1 + $0x140] sm:$0xf]
        %v432 = vld [vmem:[%s1 + $0x144] sm:$0xf]
        %v433 = vld [vmem:[%s1 + $0x148] sm:$0xf]
        %v434 = vld [vmem:[%s1 + $0x14c] sm:$0xf]
        %v435 = vld [vmem:[%s1 + $0x150] sm:$0xf]
        %v436 = vld [vmem:[%s1 + $0x154] sm:$0xf]
        %v437 = vld [vmem:[%s1 + $0x158] sm:$0xf]
        %v438 = vld [vmem:[%s1 + $0x15c] sm:$0xf]
        %v439 = vld [vmem:[%s1 + $0x160] sm:$0xf]
        %v440 = vld [vmem:[%s1 + $0x164] sm:$0xf]
        %v441 = vld [vmem:[%s1 + $0x168] sm:$0xf]
        %v442 = vld [vmem:[%s1 + $0x16c] sm:$0xf]
        %v443 = vld [vmem:[%s1 + $0x170] sm:$0xf]
        %v444 = vld [vmem:[%s1 + $0x174] sm:$0xf]
        %v445 = vld [vmem:[%s1 + $0x178] sm:$0xf]
        %v446 = vld [vmem:[%s1 + $0x17c] sm:$0xf]
        %v447 = vld [vmem:[%s1 + $0x180] sm:$0xf]
        %v448 = vld [vmem:[%s1 + $0x184] sm:$0xf]
        %v449 = vld [vmem:[%s1 + $0x188] sm:$0xf]
        %v450 = vld [vmem:[%s1 + $0x18c] sm:$0xf]
        %v451 = vld [vmem:[%s1 + $0x190] sm:$0xf]
        %v452 = vld [vmem:[%s1 + $0x194] sm:$0xf]
        %v453 = vld [vmem:[%s1 + $0x198] sm:$0xf]
        %v454 = vld [vmem:[%s1 + $0x19c] sm:$0xf]
        %v455 = vld [vmem:[%s1 + $0x1a0] sm:$0xf]
        %v456 = vld [vmem:[%s1 + $0x1a4] sm:$0xf]
        %v457 = vld [vmem:[%s1 + $0x1a8] sm:$0xf]
        %v458 = vld [vmem:[%s1 + $0x1ac] sm:$0xf]
        %v459 = vld [vmem:[%s1 + $0x1b0] sm:$0xf]
        %v460 = vld [vmem:[%s1 + $0x1b4] sm:$0xf]
        %v461 = vld [vmem:[%s1 + $0x1b8] sm:$0xf]
        %v462 = vld [vmem:[%s1 + $0x1bc] sm:$0xf]
        %v463 = vld [vmem:[%s1 + $0x1c0] sm:$0xf]
        %v464 = vld [vmem:[%s1 + $0x1c4] sm:$0xf]
        %v465 = vld [vmem:[%s1 + $0x1c8] sm:$0xf]
        %v466 = vld [vmem:[%s1 + $0x1cc] sm:$0xf]
        %v467 = vld [vmem:[%s1 + $0x1d0] sm:$0xf]
        %v468 = vld [vmem:[%s1 + $0x1d4] sm:$0xf]
        %v469 = vld [vmem:[%s1 + $0x1d8] sm:$0xf]
        %v470 = vld [vmem:[%s1 + $0x1dc] sm:$0xf]
        %v471 = vld [vmem:[%s1 + $0x1e0] sm:$0xf]
        %v472 = vld [vmem:[%s1 + $0x1e4] sm:$0xf]
        %v473 = vld [vmem:[%s1 + $0x1e8] sm:$0xf]
        %v474 = vld [vmem:[%s1 + $0x1ec] sm:$0xf]
        %v475 = vld [vmem:[%s1 + $0x1f0] sm:$0xf]
        %v476 = vld [vmem:[%s1 + $0x1f4] sm:$0xf]
        %v477 = vld [vmem:[%s1 + $0x1f8] sm:$0xf]
        %v478 = vld [vmem:[%s1 + $0x1fc] sm:$0xf]
        %v479 = vld [vmem:[%s2] sm:$0x1]
        %v481 = vlaneseq
        %v482 = vshrl.u32 %v481, 7
        %v483 = vsub.s32 0, %v482
        %v484 = vrot.slane %v479, %v483
        %v614 = vunpack.c.l.b16 %v351
        %v615 = vunpack.c.l.b16 %v352
        %v616 = vunpack.c.l.b16 %v353
        %v617 = vunpack.c.l.b16 %v354
        %v618 = vunpack.c.l.b16 %v355
        %v619 = vunpack.c.l.b16 %v356
        %v620 = vunpack.c.l.b16 %v357
        %v621 = vunpack.c.l.b16 %v358
        %v622 = vunpack.c.l.b16 %v359
        %v623 = vunpack.c.l.b16 %v360
        %v624 = vunpack.c.l.b16 %v361
        %v625 = vunpack.c.l.b16 %v362
        %v626 = vunpack.c.l.b16 %v363
        %v627 = vunpack.c.l.b16 %v364
        %v628 = vunpack.c.l.b16 %v365
        %v629 = vunpack.c.l.b16 %v366
        %v630 = vunpack.c.l.b16 %v367
        %v631 = vunpack.c.l.b16 %v368
        %v632 = vunpack.c.l.b16 %v369
        %v633 = vunpack.c.l.b16 %v370
        %v634 = vunpack.c.l.b16 %v371
        %v635 = vunpack.c.l.b16 %v372
        %v636 = vunpack.c.l.b16 %v373
        %v637 = vunpack.c.l.b16 %v374
        %v638 = vunpack.c.l.b16 %v375
        %v639 = vunpack.c.l.b16 %v376
        %v640 = vunpack.c.l.b16 %v377
        %v641 = vunpack.c.l.b16 %v378
        %v642 = vunpack.c.l.b16 %v379
        %v643 = vunpack.c.l.b16 %v380
        %v644 = vunpack.c.l.b16 %v381
        %v645 = vunpack.c.l.b16 %v382
        %v646 = vunpack.c.l.b16 %v383
        %v647 = vunpack.c.l.b16 %v384
        %v648 = vunpack.c.l.b16 %v385
        %v649 = vunpack.c.l.b16 %v386
        %v650 = vunpack.c.l.b16 %v387
        %v651 = vunpack.c.l.b16 %v388
        %v652 = vunpack.c.l.b16 %v389
        %v653 = vunpack.c.l.b16 %v390
        %v654 = vunpack.c.l.b16 %v391
        %v655 = vunpack.c.l.b16 %v392
        %v656 = vunpack.c.l.b16 %v393
        %v657 = vunpack.c.l.b16 %v394
        %v658 = vunpack.c.l.b16 %v395
        %v659 = vunpack.c.l.b16 %v396
        %v660 = vunpack.c.l.b16 %v397
        %v661 = vunpack.c.l.b16 %v398
        %v662 = vunpack.c.l.b16 %v399
        %v663 = vunpack.c.l.b16 %v400
        %v664 = vunpack.c.l.b16 %v401
        %v665 = vunpack.c.l.b16 %v402
        %v666 = vunpack.c.l.b16 %v403
        %v667 = vunpack.c.l.b16 %v404
        %v668 = vunpack.c.l.b16 %v405
        %v669 = vunpack.c.l.b16 %v406
        %v670 = vunpack.c.l.b16 %v407
        %v671 = vunpack.c.l.b16 %v408
        %v672 = vunpack.c.l.b16 %v409
        %v673 = vunpack.c.l.b16 %v410
        %v674 = vunpack.c.l.b16 %v411
        %v675 = vunpack.c.l.b16 %v412
        %v676 = vunpack.c.l.b16 %v413
        %v677 = vunpack.c.l.b16 %v414
        %v678 = vunpack.c.l.b16 %v415
        %v679 = vunpack.c.l.b16 %v416
        %v680 = vunpack.c.l.b16 %v417
        %v681 = vunpack.c.l.b16 %v418
        %v682 = vunpack.c.l.b16 %v419
        %v683 = vunpack.c.l.b16 %v420
        %v684 = vunpack.c.l.b16 %v421
        %v685 = vunpack.c.l.b16 %v422
        %v686 = vunpack.c.l.b16 %v423
        %v687 = vunpack.c.l.b16 %v424
        %v688 = vunpack.c.l.b16 %v425
        %v689 = vunpack.c.l.b16 %v426
        %v690 = vunpack.c.l.b16 %v427
        %v691 = vunpack.c.l.b16 %v428
        %v692 = vunpack.c.l.b16 %v429
        %v693 = vunpack.c.l.b16 %v430
        %v694 = vunpack.c.l.b16 %v431
        %v695 = vunpack.c.l.b16 %v432
        %v696 = vunpack.c.l.b16 %v433
        %v697 = vunpack.c.l.b16 %v434
        %v698 = vunpack.c.l.b16 %v435
        %v699 = vunpack.c.l.b16 %v436
        %v700 = vunpack.c.l.b16 %v437
        %v701 = vunpack.c.l.b16 %v438
        %v702 = vunpack.c.l.b16 %v439
        %v703 = vunpack.c.l.b16 %v440
        %v704 = vunpack.c.l.b16 %v441
        %v705 = vunpack.c.l.b16 %v442
        %v706 = vunpack.c.l.b16 %v443
        %v707 = vunpack.c.l.b16 %v444
        %v708 = vunpack.c.l.b16 %v445
        %v709 = vunpack.c.l.b16 %v446
        %v710 = vunpack.c.l.b16 %v447
        %v711 = vunpack.c.l.b16 %v448
        %v712 = vunpack.c.l.b16 %v449
        %v713 = vunpack.c.l.b16 %v450
        %v714 = vunpack.c.l.b16 %v451
        %v715 = vunpack.c.l.b16 %v452
        %v716 = vunpack.c.l.b16 %v453
        %v717 = vunpack.c.l.b16 %v454
        %v718 = vunpack.c.l.b16 %v455
        %v719 = vunpack.c.l.b16 %v456
        %v720 = vunpack.c.l.b16 %v457
        %v721 = vunpack.c.l.b16 %v458
        %v722 = vunpack.c.l.b16 %v459
        %v723 = vunpack.c.l.b16 %v460
        %v724 = vunpack.c.l.b16 %v461
        %v725 = vunpack.c.l.b16 %v462
        %v726 = vunpack.c.l.b16 %v463
        %v727 = vunpack.c.l.b16 %v464
        %v728 = vunpack.c.l.b16 %v465
        %v729 = vunpack.c.l.b16 %v466
        %v730 = vunpack.c.l.b16 %v467
        %v731 = vunpack.c.l.b16 %v468
        %v732 = vunpack.c.l.b16 %v469
        %v733 = vunpack.c.l.b16 %v470
        %v734 = vunpack.c.l.b16 %v471
        %v735 = vunpack.c.l.b16 %v472
        %v736 = vunpack.c.l.b16 %v473
        %v737 = vunpack.c.l.b16 %v474
        %v738 = vunpack.c.l.b16 %v475
        %v739 = vunpack.c.l.b16 %v476
        %v740 = vunpack.c.l.b16 %v477
        %v741 = vunpack.c.l.b16 %v478
        %v742 = vpack.c.b16 %v615, %v614
        %v743 = vpack.c.b16 %v617, %v616
        %v744 = vpack.c.b16 %v619, %v618
        %v745 = vpack.c.b16 %v621, %v620
        %v746 = vpack.c.b16 %v623, %v622
        %v747 = vpack.c.b16 %v625, %v624
        %v748 = vpack.c.b16 %v627, %v626
        %v749 = vpack.c.b16 %v629, %v628
        %v750 = vpack.c.b16 %v631, %v630
        %v751 = vpack.c.b16 %v633, %v632
        %v752 = vpack.c.b16 %v635, %v634
        %v753 = vpack.c.b16 %v637, %v636
        %v754 = vpack.c.b16 %v639, %v638
        %v755 = vpack.c.b16 %v641, %v640
        %v756 = vpack.c.b16 %v643, %v642
        %v757 = vpack.c.b16 %v645, %v644
        %v758 = vpack.c.b16 %v647, %v646
        %v759 = vpack.c.b16 %v649, %v648
        %v760 = vpack.c.b16 %v651, %v650
        %v761 = vpack.c.b16 %v653, %v652
        %v762 = vpack.c.b16 %v655, %v654
        %v763 = vpack.c.b16 %v657, %v656
        %v764 = vpack.c.b16 %v659, %v658
        %v765 = vpack.c.b16 %v661, %v660
        %v766 = vpack.c.b16 %v663, %v662
        %v767 = vpack.c.b16 %v665, %v664
        %v768 = vpack.c.b16 %v667, %v666
        %v769 = vpack.c.b16 %v669, %v668
        %v770 = vpack.c.b16 %v671, %v670
        %v771 = vpack.c.b16 %v673, %v672
        %v772 = vpack.c.b16 %v675, %v674
        %v773 = vpack.c.b16 %v677, %v676
        %v774 = vpack.c.b16 %v679, %v678
        %v775 = vpack.c.b16 %v681, %v680
        %v776 = vpack.c.b16 %v683, %v682
        %v777 = vpack.c.b16 %v685, %v684
        %v778 = vpack.c.b16 %v687, %v686
        %v779 = vpack.c.b16 %v689, %v688
        %v780 = vpack.c.b16 %v691, %v690
        %v781 = vpack.c.b16 %v693, %v692
        %v782 = vpack.c.b16 %v695, %v694
        %v783 = vpack.c.b16 %v697, %v696
        %v784 = vpack.c.b16 %v699, %v698
        %v785 = vpack.c.b16 %v701, %v700
        %v786 = vpack.c.b16 %v703, %v702
        %v787 = vpack.c.b16 %v705, %v704
        %v788 = vpack.c.b16 %v707, %v706
        %v789 = vpack.c.b16 %v709, %v708
        %v790 = vpack.c.b16 %v711, %v710
        %v791 = vpack.c.b16 %v713, %v712
        %v792 = vpack.c.b16 %v715, %v714
        %v793 = vpack.c.b16 %v717, %v716
        %v794 = vpack.c.b16 %v719, %v718
        %v795 = vpack.c.b16 %v721, %v720
        %v796 = vpack.c.b16 %v723, %v722
        %v797 = vpack.c.b16 %v725, %v724
        %v798 = vpack.c.b16 %v727, %v726
        %v799 = vpack.c.b16 %v729, %v728
        %v800 = vpack.c.b16 %v731, %v730
        %v801 = vpack.c.b16 %v733, %v732
        %v802 = vpack.c.b16 %v735, %v734
        %v803 = vpack.c.b16 %v737, %v736
        %v804 = vpack.c.b16 %v739, %v738
        %v805 = vpack.c.b16 %v741, %v740
        %870 = vmatprep.subr.bf16.mxu0 0
        %871 = vmatpush1.bf16.msra.mxu0 %v742
        %872 = vmatprep.subr.bf16.mxu0 0
        %873 = vmatpush1.bf16.msra.mxu0 %v743
        %874 = vmatprep.subr.bf16.mxu0 0
        %875 = vmatpush1.bf16.msra.mxu0 %v744
        %876 = vmatprep.subr.bf16.mxu0 0
        %877 = vmatpush1.bf16.msra.mxu0 %v745
        %878 = vmatprep.subr.bf16.mxu0 0
        %879 = vmatpush1.bf16.msra.mxu0 %v746
        %880 = vmatprep.subr.bf16.mxu0 0
        %881 = vmatpush1.bf16.msra.mxu0 %v747
        %882 = vmatprep.subr.bf16.mxu0 0
        %883 = vmatpush1.bf16.msra.mxu0 %v748
        %884 = vmatprep.subr.bf16.mxu0 0
        %885 = vmatpush1.bf16.msra.mxu0 %v749
        %886 = vmatprep.subr.bf16.mxu0 0
        %887 = vmatpush1.bf16.msra.mxu0 %v750
        %888 = vmatprep.subr.bf16.mxu0 0
        %889 = vmatpush1.bf16.msra.mxu0 %v751
        %890 = vmatprep.subr.bf16.mxu0 0
        %891 = vmatpush1.bf16.msra.mxu0 %v752
        %892 = vmatprep.subr.bf16.mxu0 0
        %893 = vmatpush1.bf16.msra.mxu0 %v753
        %894 = vmatprep.subr.bf16.mxu0 0
        %895 = vmatpush1.bf16.msra.mxu0 %v754
        %896 = vmatprep.subr.bf16.mxu0 0
        %897 = vmatpush1.bf16.msra.mxu0 %v755
        %898 = vmatprep.subr.bf16.mxu0 0
        %899 = vmatpush1.bf16.msra.mxu0 %v756
        %900 = vmatprep.subr.bf16.mxu0 0
        %901 = vmatpush1.bf16.msra.mxu0 %v757
        %902 = vmatprep.mubr.bf16.mxu0 %v320
        %903 = vmatmul.mubr.bf16.gmra.mrb[0].mxu0 %v319
        %v904 = vpop.f32.mrb[0].mxu0
        %v905 = vadd.f32 %v484, %v904
        %v906 = vpop.f32.mrb[0].mxu0
        %v907 = vpop.f32.mrb[0].mxu0
        %v908 = vadd.f32 %v484, %v907
        %v909 = vpop.f32.mrb[0].mxu0
        %910 = vmatprep.mubr.bf16.mxu0 %v328
        %911 = vmatmul.mubr.bf16.gmra.mrb[0].mxu0 %v327
        %v912 = vpop.f32.mrb[0].mxu0
        %v913 = vadd.f32 %v484, %v912
        %v914 = vpop.f32.mrb[0].mxu0
        %v915 = vpop.f32.mrb[0].mxu0
        %v916 = vadd.f32 %v484, %v915
        %v917 = vpop.f32.mrb[0].mxu0
        %918 = vmatprep.mubr.bf16.mxu0 %v336
        %919 = vmatmul.mubr.bf16.gmra.mrb[0].mxu0 %v335
        %v920 = vpop.f32.mrb[0].mxu0
        %v921 = vadd.f32 %v484, %v920
        %v922 = vpop.f32.mrb[0].mxu0
        %v923 = vpop.f32.mrb[0].mxu0
        %v924 = vadd.f32 %v484, %v923
        %v925 = vpop.f32.mrb[0].mxu0
        %926 = vmatprep.mubr.bf16.mxu0 %v344
        %927 = vmatmul.mubr.bf16.gmra.mrb[0].mxu0 %v343
        %v928 = vpop.f32.mrb[0].mxu0
        %v929 = vadd.f32 %v484, %v928
        %v930 = vpop.f32.mrb[0].mxu0
        %v931 = vpop.f32.mrb[0].mxu0
        %v932 = vadd.f32 %v484, %v931
        %v933 = vpop.f32.mrb[0].mxu0
        %934 = vdwg.mxu0
        %935 = vmatprep.subr.bf16.mxu0 0
        %936 = vmatpush1.bf16.msra.mxu0 %v758
        %937 = vmatprep.subr.bf16.mxu0 0
        %938 = vmatpush1.bf16.msra.mxu0 %v759
        %939 = vmatprep.subr.bf16.mxu0 0
        %940 = vmatpush1.bf16.msra.mxu0 %v760
        %941 = vmatprep.subr.bf16.mxu0 0
        %942 = vmatpush1.bf16.msra.mxu0 %v761
        %943 = vmatprep.subr.bf16.mxu0 0
        %944 = vmatpush1.bf16.msra.mxu0 %v762
        %945 = vmatprep.subr.bf16.mxu0 0
        %946 = vmatpush1.bf16.msra.mxu0 %v763
        %947 = vmatprep.subr.bf16.mxu0 0
        %948 = vmatpush1.bf16.msra.mxu0 %v764
        %949 = vmatprep.subr.bf16.mxu0 0
        %950 = vmatpush1.bf16.msra.mxu0 %v765
        %951 = vmatprep.subr.bf16.mxu0 0
        %952 = vmatpush1.bf16.msra.mxu0 %v766
        %953 = vmatprep.subr.bf16.mxu0 0
        %954 = vmatpush1.bf16.msra.mxu0 %v767
        %955 = vmatprep.subr.bf16.mxu0 0
        %956 = vmatpush1.bf16.msra.mxu0 %v768
        %957 = vmatprep.subr.bf16.mxu0 0
        %958 = vmatpush1.bf16.msra.mxu0 %v769
        %959 = vmatprep.subr.bf16.mxu0 0
        %960 = vmatpush1.bf16.msra.mxu0 %v770
        %961 = vmatprep.subr.bf16.mxu0 0
        %962 = vmatpush1.bf16.msra.mxu0 %v771
        %963 = vmatprep.subr.bf16.mxu0 0
        %964 = vmatpush1.bf16.msra.mxu0 %v772
        %965 = vmatprep.subr.bf16.mxu0 0
        %966 = vmatpush1.bf16.msra.mxu0 %v773
        %967 = vmatprep.mubr.bf16.mxu0 %v322
        %968 = vmatmul.mubr.bf16.gmra.mrb[0].mxu0 %v321
        %v969 = vpop.f32.mrb[0].mxu0
        %v970 = vadd.f32 %v905, %v969
        %v971 = vpop.f32.mrb[0].mxu0
        %v972 = vpop.f32.mrb[0].mxu0
        %v973 = vadd.f32 %v908, %v972
        %v974 = vpop.f32.mrb[0].mxu0
        %975 = vmatprep.mubr.bf16.mxu0 %v330
        %976 = vmatmul.mubr.bf16.gmra.mrb[0].mxu0 %v329
        %v977 = vpop.f32.mrb[0].mxu0
        %v978 = vadd.f32 %v913, %v977
        %v979 = vpop.f32.mrb[0].mxu0
        %v980 = vpop.f32.mrb[0].mxu0
        %v981 = vadd.f32 %v916, %v980
        %v982 = vpop.f32.mrb[0].mxu0
        %983 = vmatprep.mubr.bf16.mxu0 %v338
        %984 = vmatmul.mubr.bf16.gmra.mrb[0].mxu0 %v337
        %v985 = vpop.f32.mrb[0].mxu0
        %v986 = vadd.f32 %v921, %v985
        %v987 = vpop.f32.mrb[0].mxu0
        %v988 = vpop.f32.mrb[0].mxu0
        %v989 = vadd.f32 %v924, %v988
        %v990 = vpop.f32.mrb[0].mxu0
        %991 = vmatprep.mubr.bf16.mxu0 %v346
        %992 = vmatmul.mubr.bf16.gmra.mrb[0].mxu0 %v345
        %v993 = vpop.f32.mrb[0].mxu0
        %v994 = vadd.f32 %v929, %v993
        %v995 = vpop.f32.mrb[0].mxu0
        %v996 = vpop.f32.mrb[0].mxu0
        %v997 = vadd.f32 %v932, %v996
        %v998 = vpop.f32.mrb[0].mxu0
        %999 = vdwg.mxu0
        %1000 = vmatprep.subr.bf16.mxu0 0
        %1001 = vmatpush1.bf16.msra.mxu0 %v774
        %1002 = vmatprep.subr.bf16.mxu0 0
        %1003 = vmatpush1.bf16.msra.mxu0 %v775
        %1004 = vmatprep.subr.bf16.mxu0 0
        %1005 = vmatpush1.bf16.msra.mxu0 %v776
        %1006 = vmatprep.subr.bf16.mxu0 0
        %1007 = vmatpush1.bf16.msra.mxu0 %v777
        %1008 = vmatprep.subr.bf16.mxu0 0
        %1009 = vmatpush1.bf16.msra.mxu0 %v778
        %1010 = vmatprep.subr.bf16.mxu0 0
        %1011 = vmatpush1.bf16.msra.mxu0 %v779
        %1012 = vmatprep.subr.bf16.mxu0 0
        %1013 = vmatpush1.bf16.msra.mxu0 %v780
        %1014 = vmatprep.subr.bf16.mxu0 0
        %1015 = vmatpush1.bf16.msra.mxu0 %v781
        %1016 = vmatprep.subr.bf16.mxu0 0
        %1017 = vmatpush1.bf16.msra.mxu0 %v782
        %1018 = vmatprep.subr.bf16.mxu0 0
        %1019 = vmatpush1.bf16.msra.mxu0 %v783
        %1020 = vmatprep.subr.bf16.mxu0 0
        %1021 = vmatpush1.bf16.msra.mxu0 %v784
        %1022 = vmatprep.subr.bf16.mxu0 0
        %1023 = vmatpush1.bf16.msra.mxu0 %v785
        %1024 = vmatprep.subr.bf16.mxu0 0
        %1025 = vmatpush1.bf16.msra.mxu0 %v786
        %1026 = vmatprep.subr.bf16.mxu0 0
        %1027 = vmatpush1.bf16.msra.mxu0 %v787
        %1028 = vmatprep.subr.bf16.mxu0 0
        %1029 = vmatpush1.bf16.msra.mxu0 %v788
        %1030 = vmatprep.subr.bf16.mxu0 0
        %1031 = vmatpush1.bf16.msra.mxu0 %v789
        %1032 = vmatprep.mubr.bf16.mxu0 %v324
        %1033 = vmatmul.mubr.bf16.gmra.mrb[0].mxu0 %v323
        %v1034 = vpop.f32.mrb[0].mxu0
        %v1035 = vadd.f32 %v970, %v1034
        %v1036 = vpop.f32.mrb[0].mxu0
        %v1037 = vpop.f32.mrb[0].mxu0
        %v1038 = vadd.f32 %v973, %v1037
        %v1039 = vpop.f32.mrb[0].mxu0
        %1040 = vmatprep.mubr.bf16.mxu0 %v332
        %1041 = vmatmul.mubr.bf16.gmra.mrb[0].mxu0 %v331
        %v1042 = vpop.f32.mrb[0].mxu0
        %v1043 = vadd.f32 %v978, %v1042
        %v1044 = vpop.f32.mrb[0].mxu0
        %v1045 = vpop.f32.mrb[0].mxu0
        %v1046 = vadd.f32 %v981, %v1045
        %v1047 = vpop.f32.mrb[0].mxu0
        %1048 = vmatprep.mubr.bf16.mxu0 %v340
        %1049 = vmatmul.mubr.bf16.gmra.mrb[0].mxu0 %v339
        %v1050 = vpop.f32.mrb[0].mxu0
        %v1051 = vadd.f32 %v986, %v1050
        %v1052 = vpop.f32.mrb[0].mxu0
        %v1053 = vpop.f32.mrb[0].mxu0
        %v1054 = vadd.f32 %v989, %v1053
        %v1055 = vpop.f32.mrb[0].mxu0
        %1056 = vmatprep.mubr.bf16.mxu0 %v348
        %1057 = vmatmul.mubr.bf16.gmra.mrb[0].mxu0 %v347
        %v1058 = vpop.f32.mrb[0].mxu0
        %v1059 = vadd.f32 %v994, %v1058
        %v1060 = vpop.f32.mrb[0].mxu0
        %v1061 = vpop.f32.mrb[0].mxu0
        %v1062 = vadd.f32 %v997, %v1061
        %v1063 = vpop.f32.mrb[0].mxu0
        %1064 = vdwg.mxu0
        %1065 = vmatprep.subr.bf16.mxu0 0
        %1066 = vmatpush1.bf16.msra.mxu0 %v790
        %1067 = vmatprep.subr.bf16.mxu0 0
        %1068 = vmatpush1.bf16.msra.mxu0 %v791
        %1069 = vmatprep.subr.bf16.mxu0 0
        %1070 = vmatpush1.bf16.msra.mxu0 %v792
        %1071 = vmatprep.subr.bf16.mxu0 0
        %1072 = vmatpush1.bf16.msra.mxu0 %v793
        %1073 = vmatprep.subr.bf16.mxu0 0
        %1074 = vmatpush1.bf16.msra.mxu0 %v794
        %1075 = vmatprep.subr.bf16.mxu0 0
        %1076 = vmatpush1.bf16.msra.mxu0 %v795
        %1077 = vmatprep.subr.bf16.mxu0 0
        %1078 = vmatpush1.bf16.msra.mxu0 %v796
        %1079 = vmatprep.subr.bf16.mxu0 0
        %1080 = vmatpush1.bf16.msra.mxu0 %v797
        %1081 = vmatprep.subr.bf16.mxu0 0
        %1082 = vmatpush1.bf16.msra.mxu0 %v798
        %1083 = vmatprep.subr.bf16.mxu0 0
        %1084 = vmatpush1.bf16.msra.mxu0 %v799
        %1085 = vmatprep.subr.bf16.mxu0 0
        %1086 = vmatpush1.bf16.msra.mxu0 %v800
        %1087 = vmatprep.subr.bf16.mxu0 0
        %1088 = vmatpush1.bf16.msra.mxu0 %v801
        %1089 = vmatprep.subr.bf16.mxu0 0
        %1090 = vmatpush1.bf16.msra.mxu0 %v802
        %1091 = vmatprep.subr.bf16.mxu0 0
        %1092 = vmatpush1.bf16.msra.mxu0 %v803
        %1093 = vmatprep.subr.bf16.mxu0 0
        %1094 = vmatpush1.bf16.msra.mxu0 %v804
        %1095 = vmatprep.subr.bf16.mxu0 0
        %1096 = vmatpush1.bf16.msra.mxu0 %v805
        %1097 = vmatprep.mubr.bf16.mxu0 %v326
        %1098 = vmatmul.mubr.bf16.gmra.mrb[0].mxu0 %v325
        %v1099 = vpop.f32.mrb[0].mxu0
        %v1100 = vadd.f32 %v1035, %v1099
        %v1101 = vpop.f32.mrb[0].mxu0
        %v1102 = vpop.f32.mrb[0].mxu0
        %v1103 = vadd.f32 %v1038, %v1102
        %v1104 = vpop.f32.mrb[0].mxu0
        %1105 = vmatprep.mubr.bf16.mxu0 %v334
        %1106 = vmatmul.mubr.bf16.gmra.mrb[0].mxu0 %v333
        %v1107 = vpop.f32.mrb[0].mxu0
        %v1108 = vadd.f32 %v1043, %v1107
        %v1109 = vpop.f32.mrb[0].mxu0
        %v1110 = vpop.f32.mrb[0].mxu0
        %v1111 = vadd.f32 %v1046, %v1110
        %v1112 = vpop.f32.mrb[0].mxu0
        %1113 = vmatprep.mubr.bf16.mxu0 %v342
        %1114 = vmatmul.mubr.bf16.gmra.mrb[0].mxu0 %v341
        %v1115 = vpop.f32.mrb[0].mxu0
        %v1116 = vadd.f32 %v1051, %v1115
        %v1117 = vpop.f32.mrb[0].mxu0
        %v1118 = vpop.f32.mrb[0].mxu0
        %v1119 = vadd.f32 %v1054, %v1118
        %v1120 = vpop.f32.mrb[0].mxu0
        %1121 = vmatprep.mubr.bf16.mxu0 %v350
        %1122 = vmatmul.mubr.bf16.gmra.mrb[0].mxu0 %v349
        %v1123 = vpop.f32.mrb[0].mxu0
        %v1124 = vadd.f32 %v1059, %v1123
        %v1125 = vpop.f32.mrb[0].mxu0
        %v1126 = vpop.f32.mrb[0].mxu0
        %v1127 = vadd.f32 %v1062, %v1126
        %v1128 = vpop.f32.mrb[0].mxu0
        %1129 = vdwg.mxu0
        %v1130 = vmax.f32 %v1100, 0.0
        %v1131 = vmax.f32 %v1103, 0.0
        %v1132 = vmax.f32 %v1108, 0.0
        %v1133 = vmax.f32 %v1111, 0.0
        %v1134 = vmax.f32 %v1116, 0.0
        %v1135 = vmax.f32 %v1119, 0.0
        %v1136 = vmax.f32 %v1124, 0.0
        %v1137 = vmax.f32 %v1127, 0.0
        %v1138 = vpack.c.bf16 %v1131, %v1130
        %v1139 = vpack.c.bf16 %v1133, %v1132
        %v1140 = vpack.c.bf16 %v1135, %v1134
        %v1141 = vpack.c.bf16 %v1137, %v1136
        %v1142 = vld [vmem:[%s3] sm:$0xf]
        %v1143 = vld [vmem:[%s3 + $0x4] sm:$0xf]
        %v1144 = vld [vmem:[%s3 + $0x8] sm:$0xf]
        %v1145 = vld [vmem:[%s3 + $0xc] sm:$0xf]
        %v1146 = vld [vmem:[%s3 + $0x10] sm:$0xf]
        %v1147 = vld [vmem:[%s3 + $0x14] sm:$0xf]
        %v1148 = vld [vmem:[%s3 + $0x18] sm:$0xf]
        %v1149 = vld [vmem:[%s3 + $0x1c] sm:$0xf]
        %v1150 = vld [vmem:[%s3 + $0x20] sm:$0xf]
        %v1151 = vld [vmem:[%s3 + $0x24] sm:$0xf]
        %v1152 = vld [vmem:[%s3 + $0x28] sm:$0xf]
        %v1153 = vld [vmem:[%s3 + $0x2c] sm:$0xf]
        %v1154 = vld [vmem:[%s3 + $0x30] sm:$0xf]
        %v1155 = vld [vmem:[%s3 + $0x34] sm:$0xf]
        %v1156 = vld [vmem:[%s3 + $0x38] sm:$0xf]
        %v1157 = vld [vmem:[%s3 + $0x3c] sm:$0xf]
        %v1158 = vld [vmem:[%s4] sm:$0x1]
        %v1160 = vlaneseq
        %v1161 = vshrl.u32 %v1160, 7
        %v1162 = vsub.s32 0, %v1161
        %v1163 = vrot.slane %v1158, %v1162
        %v1181 = vunpack.c.l.b16 %v1142
        %v1182 = vunpack.c.l.b16 %v1143
        %v1183 = vunpack.c.l.b16 %v1144
        %v1184 = vunpack.c.l.b16 %v1145
        %v1185 = vunpack.c.l.b16 %v1146
        %v1186 = vunpack.c.l.b16 %v1147
        %v1187 = vunpack.c.l.b16 %v1148
        %v1188 = vunpack.c.l.b16 %v1149
        %v1189 = vunpack.c.l.b16 %v1150
        %v1190 = vunpack.c.l.b16 %v1151
        %v1191 = vunpack.c.l.b16 %v1152
        %v1192 = vunpack.c.l.b16 %v1153
        %v1193 = vunpack.c.l.b16 %v1154
        %v1194 = vunpack.c.l.b16 %v1155
        %v1195 = vunpack.c.l.b16 %v1156
        %v1196 = vunpack.c.l.b16 %v1157
        %v1197 = vpack.c.b16 %v1182, %v1181
        %v1198 = vpack.c.b16 %v1184, %v1183
        %v1199 = vpack.c.b16 %v1186, %v1185
        %v1200 = vpack.c.b16 %v1188, %v1187
        %v1201 = vpack.c.b16 %v1190, %v1189
        %v1202 = vpack.c.b16 %v1192, %v1191
        %v1203 = vpack.c.b16 %v1194, %v1193
        %v1204 = vpack.c.b16 %v1196, %v1195
        %1213 = vmatprep.subr.bf16.mxu0 0
        %1214 = vmatpush1.bf16.msra.mxu0 %v1197
        %1215 = vmatprep.subr.bf16.mxu0 0
        %1216 = vmatpush1.bf16.msra.mxu0 %v1198
        %1217 = vmatprep.subr.bf16.mxu0 0
        %1218 = vmatpush1.bf16.msra.mxu0 %v1199
        %1219 = vmatprep.subr.bf16.mxu0 0
        %1220 = vmatpush1.bf16.msra.mxu0 %v1200
        %1221 = vmatprep.subr.bf16.mxu0 0
        %1222 = vmatpush1.bf16.msra.mxu0 %v1201
        %1223 = vmatprep.subr.bf16.mxu0 0
        %1224 = vmatpush1.bf16.msra.mxu0 %v1202
        %1225 = vmatprep.subr.bf16.mxu0 0
        %1226 = vmatpush1.bf16.msra.mxu0 %v1203
        %1227 = vmatprep.subr.bf16.mxu0 0
        %1228 = vmatpush1.bf16.msra.mxu0 %v1204
        %1229 = vmatprep.subr.bf16.mxu0 0
        %1230 = vmatpush1.bf16.msra.mxu0 0
        %1231 = vmatprep.subr.bf16.mxu0 0
        %1232 = vmatpush1.bf16.msra.mxu0 0
        %1233 = vmatprep.subr.bf16.mxu0 0
        %1234 = vmatpush1.bf16.msra.mxu0 0
        %1235 = vmatprep.subr.bf16.mxu0 0
        %1236 = vmatpush1.bf16.msra.mxu0 0
        %1237 = vmatprep.subr.bf16.mxu0 0
        %1238 = vmatpush1.bf16.msra.mxu0 0
        %1239 = vmatprep.subr.bf16.mxu0 0
        %1240 = vmatpush1.bf16.msra.mxu0 0
        %1241 = vmatprep.subr.bf16.mxu0 0
        %1242 = vmatpush1.bf16.msra.mxu0 0
        %1243 = vmatprep.subr.bf16.mxu0 0
        %1244 = vmatpush1.bf16.msra.mxu0 0
        %1245 = vmatprep.mubr.bf16.mxu0 0
        %1246 = vmatmul.mubr.bf16.gmra.mrb[0].mxu0 %v1138
        %v1247 = vpop.f32.mrb[0].mxu0
        %v1248 = vadd.f32 %v1163, %v1247
        %v1249 = vpop.f32.mrb[0].mxu0
        %v1250 = vpop.f32.mrb[0].mxu0
        %v1251 = vadd.f32 %v1163, %v1250
        %v1252 = vpop.f32.mrb[0].mxu0
        %1253 = vmatprep.mubr.bf16.mxu0 0
        %1254 = vmatmul.mubr.bf16.gmra.mrb[0].mxu0 %v1139
        %v1255 = vpop.f32.mrb[0].mxu0
        %v1256 = vadd.f32 %v1163, %v1255
        %v1257 = vpop.f32.mrb[0].mxu0
        %v1258 = vpop.f32.mrb[0].mxu0
        %v1259 = vadd.f32 %v1163, %v1258
        %v1260 = vpop.f32.mrb[0].mxu0
        %1261 = vmatprep.mubr.bf16.mxu0 0
        %1262 = vmatmul.mubr.bf16.gmra.mrb[0].mxu0 %v1140
        %v1263 = vpop.f32.mrb[0].mxu0
        %v1264 = vadd.f32 %v1163, %v1263
        %v1265 = vpop.f32.mrb[0].mxu0
        %v1266 = vpop.f32.mrb[0].mxu0
        %v1267 = vadd.f32 %v1163, %v1266
        %v1268 = vpop.f32.mrb[0].mxu0
        %1269 = vmatprep.mubr.bf16.mxu0 0
        %1270 = vmatmul.mubr.bf16.gmra.mrb[0].mxu0 %v1141
        %v1271 = vpop.f32.mrb[0].mxu0
        %v1272 = vadd.f32 %v1163, %v1271
        %v1273 = vpop.f32.mrb[0].mxu0
        %v1274 = vpop.f32.mrb[0].mxu0
        %v1275 = vadd.f32 %v1163, %v1274
        %v1276 = vpop.f32.mrb[0].mxu0
        %1277 = vdwg.mxu0
        %1278 = vst [vmem:[%s231] sm:$0xff] %v1248
        %1279 = vst [vmem:[%s231 + $0x8] sm:$0xff] %v1251
        %1280 = vst [vmem:[%s231 + $0x10] sm:$0xff] %v1256
        %1281 = vst [vmem:[%s231 + $0x18] sm:$0xff] %v1259
        %1282 = vst [vmem:[%s231 + $0x20] sm:$0xff] %v1264
        %1283 = vst [vmem:[%s231 + $0x28] sm:$0xff] %v1267
        %1284 = vst [vmem:[%s231 + $0x30] sm:$0xff] %v1272
        %1285 = vst [vmem:[%s231 + $0x38] sm:$0xff] %v1275
        %s1286 = sand.u32 %s134, 1
        %s1287 = sand.u32 %s134, 1
        %s1288 = smul.addr %s1287, 64
        %s1289 = scalar_lea.vmem [#allocation2], %s1288
        // Predicated region
        $region41: #{module_forward.1} parent=39 // pred_check
          %p1290 = pneg %p144
        $region42: #{module_forward.1} parent=39 // pred_check_branch
          %1292 = sbr.rel (%p1290) target = $region44
        $region43: #{module_forward.1} parent=39 // pred_region
          %s1293 = smul.u32 8, %s16
          %s1294 = ssub.s32 25, %s1293
          %p1295 = scmp.lt.s32.totalorder %s1294, 8
          %s1296 = scalar_select %p1295, %s1294, 8
          %s1297 = smul.u32 128, %s1296
          %p1298 = scmp.ne.s32.totalorder 0, %s1297
          %s1299 = smul.addr %s1293, 8
          %s1300 = scalar_lea.vmem %s5, %s1299
          // Predicated region
          $region45: #{module_forward.1} parent=43 // pred_check
            %p1301 = pneg %p1298
          $region46: #{module_forward.1} parent=43 // pred_check_branch
            %1303 = sbr.rel (%p1301) target = $region48
          $region47: #{module_forward.1} parent=43 // pred_region
            // Predicated region
            $region49: #{module_forward.1} parent=47 // pred_check
              _
            $region50: #{module_forward.1} parent=47 // pred_check_branch
              %1305 = sbr.rel (0) target = $region52
            $region51: #{module_forward.1} parent=47 // pred_region
              // Predicated region
              $region71: #{module_forward.1} parent=51 // pred_check
                _
              $region72: #{module_forward.1} parent=51 // pred_check_branch
                %1368 = sbr.rel (0) target = $region74
              $region73: #{module_forward.1} parent=51 // pred_region
                %s1369 = sshrl.u32 %s1296, 3
                // While loop
                $region75: #{module_forward.1} parent=73 // loop_pre_header
                  _
                $region76: #{module_forward.1} parent=73 // loop_header
                  %s1371 = sphi 0, %s1373
                  %p1372 = scmp.ge.s32.totalorder %s1371, %s1369
                  %s1376 = sphi 0, %s1397
                  %s1377 = sphi %s1289, %s1400
                  %s1378 = sphi %s1300, %s1401
                $region77: #{module_forward.1} parent=73 // loop_header_branch
                  %1375 = sbr.rel (%p1372) target = $region81
                $region78: #{module_forward.1} parent=73 // loop_body
                  %v1379 = vld [vmem:[%s1377] sm:$0xff]
                  %1380 = vst [vmem:[%s1378] sm:$0xff] %v1379
                  %v1381 = vld [vmem:[%s1377 + $0x8] sm:$0xff]
                  %1382 = vst [vmem:[%s1378 + $0x8] sm:$0xff] %v1381
                  %v1383 = vld [vmem:[%s1377 + $0x10] sm:$0xff]
                  %1384 = vst [vmem:[%s1378 + $0x10] sm:$0xff] %v1383
                  %v1385 = vld [vmem:[%s1377 + $0x18] sm:$0xff]
                  %1386 = vst [vmem:[%s1378 + $0x18] sm:$0xff] %v1385
                  %v1387 = vld [vmem:[%s1377 + $0x20] sm:$0xff]
                  %1388 = vst [vmem:[%s1378 + $0x20] sm:$0xff] %v1387
                  %v1389 = vld [vmem:[%s1377 + $0x28] sm:$0xff]
                  %1390 = vst [vmem:[%s1378 + $0x28] sm:$0xff] %v1389
                  %v1391 = vld [vmem:[%s1377 + $0x30] sm:$0xff]
                  %1392 = vst [vmem:[%s1378 + $0x30] sm:$0xff] %v1391
                  %v1393 = vld [vmem:[%s1377 + $0x38] sm:$0xff]
                  %1394 = vst [vmem:[%s1378 + $0x38] sm:$0xff] %v1393
                  %s1395 = sadd.s32 1, %s1376
                  %p1396 = scmp.ge.s32.totalorder %s1395, %s1369
                  %s1397 = scalar_select %p1396, 0, %s1395
                  %s1398 = smul.u32 %s1397, 64
                  %s1399 = smul.u32 %s1397, 64
                  %s1400 = scalar_lea.vmem %s1289, %s1398 [#allocation2]
                  %s1401 = scalar_lea.vmem %s1300, %s1399
                $region79: #{module_forward.1} parent=73 // loop_footer
                  %s1373 = sadd.s32 %s1371, 1
                $region80: #{module_forward.1} parent=73 // loop_footer_branch
                  %1370 = sbr.rel target = $region76
                $region81: #{module_forward.1} parent=73 // loop_exit
                  _
                %s1402 = sshrl.u32 %s1296, 3
                %s1403 = sand.u32 %s1296, 7
                %s1404 = smul.u32 %s1402, 8
                %s1405 = smul.u32 8, %s1404
                %s1406 = scalar_lea.vmem %s1289, %s1405 [#allocation2]
                %s1407 = smul.u32 8, %s1404
                %s1408 = scalar_lea.vmem %s1300, %s1407
                // While loop
                $region82: #{module_forward.1} parent=73 // loop_pre_header
                  _
                $region83: #{module_forward.1} parent=73 // loop_header
                  %s1410 = sphi 0, %s1412
                  %p1411 = scmp.ge.s32.totalorder %s1410, %s1403
                  %s1415 = sphi 0, %s1422
                  %s1416 = sphi %s1406, %s1425
                  %s1417 = sphi %s1408, %s1426
                $region84: #{module_forward.1} parent=73 // loop_header_branch
                  %1414 = sbr.rel (%p1411) target = $region88
                $region85: #{module_forward.1} parent=73 // loop_body
                  %v1418 = vld [vmem:[%s1416] sm:$0xff]
                  %1419 = vst [vmem:[%s1417] sm:$0xff] %v1418
                  %s1420 = sadd.s32 1, %s1415
                  %p1421 = scmp.ge.s32.totalorder %s1420, %s1403
                  %s1422 = scalar_select %p1421, 0, %s1420
                  %s1423 = smul.u32 %s1422, 8
                  %s1424 = smul.u32 %s1422, 8
                  %s1425 = scalar_lea.vmem %s1406, %s1423 [#allocation2]
                  %s1426 = scalar_lea.vmem %s1408, %s1424
                $region86: #{module_forward.1} parent=73 // loop_footer
                  %s1412 = sadd.s32 %s1410, 1
                $region87: #{module_forward.1} parent=73 // loop_footer_branch
                  %1409 = sbr.rel target = $region83
                $region88: #{module_forward.1} parent=73 // loop_exit
                  _
              $region74: #{module_forward.1} parent=51 // pred_fallthru
                _
              // Predicated region
              $region89: #{module_forward.1} parent=51 // pred_check
                _
              $region90: #{module_forward.1} parent=51 // pred_check_branch
                %1428 = sbr.rel target = $region92
              $region91: #{module_forward.1} parent=51 // pred_region
                _
              $region92: #{module_forward.1} parent=51 // pred_fallthru
                _
            $region52: #{module_forward.1} parent=47 // pred_fallthru
              _
            // Predicated region
            $region53: #{module_forward.1} parent=47 // pred_check
              _
            $region54: #{module_forward.1} parent=47 // pred_check_branch
              %1307 = sbr.rel target = $region56
            $region55: #{module_forward.1} parent=47 // pred_region
              %s1309 = sshrl.u32 %s1296, 3
              // While loop
              $region57: #{module_forward.1} parent=55 // loop_pre_header
                _
              $region58: #{module_forward.1} parent=55 // loop_header
                %s1311 = sphi 0, %s1313
                %p1312 = scmp.ge.s32.totalorder %s1311, %s1309
                %s1316 = sphi 0, %s1337
                %s1317 = sphi %s1289, %s1340
                %s1318 = sphi %s1300, %s1341
              $region59: #{module_forward.1} parent=55 // loop_header_branch
                %1315 = sbr.rel (%p1312) target = $region63
              $region60: #{module_forward.1} parent=55 // loop_body
                %v1319 = vld [vmem:[%s1317] sm:$0xff]
                %1320 = vst [vmem:[%s1318] sm:$0xff] %v1319
                %v1321 = vld [vmem:[%s1317 + $0x8] sm:$0xff]
                %1322 = vst [vmem:[%s1318 + $0x8] sm:$0xff] %v1321
                %v1323 = vld [vmem:[%s1317 + $0x10] sm:$0xff]
                %1324 = vst [vmem:[%s1318 + $0x10] sm:$0xff] %v1323
                %v1325 = vld [vmem:[%s1317 + $0x18] sm:$0xff]
                %1326 = vst [vmem:[%s1318 + $0x18] sm:$0xff] %v1325
                %v1327 = vld [vmem:[%s1317 + $0x20] sm:$0xff]
                %1328 = vst [vmem:[%s1318 + $0x20] sm:$0xff] %v1327
                %v1329 = vld [vmem:[%s1317 + $0x28] sm:$0xff]
                %1330 = vst [vmem:[%s1318 + $0x28] sm:$0xff] %v1329
                %v1331 = vld [vmem:[%s1317 + $0x30] sm:$0xff]
                %1332 = vst [vmem:[%s1318 + $0x30] sm:$0xff] %v1331
                %v1333 = vld [vmem:[%s1317 + $0x38] sm:$0xff]
                %1334 = vst [vmem:[%s1318 + $0x38] sm:$0xff] %v1333
                %s1335 = sadd.s32 1, %s1316
                %p1336 = scmp.ge.s32.totalorder %s1335, %s1309
                %s1337 = scalar_select %p1336, 0, %s1335
                %s1338 = smul.u32 %s1337, 64
                %s1339 = smul.u32 %s1337, 64
                %s1340 = scalar_lea.vmem %s1289, %s1338 [#allocation2]
                %s1341 = scalar_lea.vmem %s1300, %s1339
              $region61: #{module_forward.1} parent=55 // loop_footer
                %s1313 = sadd.s32 %s1311, 1
              $region62: #{module_forward.1} parent=55 // loop_footer_branch
                %1310 = sbr.rel target = $region58
              $region63: #{module_forward.1} parent=55 // loop_exit
                _
              %s1342 = sshrl.u32 %s1296, 3
              %s1343 = sand.u32 %s1296, 7
              %s1344 = smul.u32 %s1342, 8
              %s1345 = smul.u32 8, %s1344
              %s1346 = scalar_lea.vmem %s1289, %s1345 [#allocation2]
              %s1347 = smul.u32 8, %s1344
              %s1348 = scalar_lea.vmem %s1300, %s1347
              // While loop
              $region64: #{module_forward.1} parent=55 // loop_pre_header
                _
              $region65: #{module_forward.1} parent=55 // loop_header
                %s1350 = sphi 0, %s1352
                %p1351 = scmp.ge.s32.totalorder %s1350, %s1343
                %s1355 = sphi 0, %s1362
                %s1356 = sphi %s1346, %s1365
                %s1357 = sphi %s1348, %s1366
              $region66: #{module_forward.1} parent=55 // loop_header_branch
                %1354 = sbr.rel (%p1351) target = $region70
              $region67: #{module_forward.1} parent=55 // loop_body
                %v1358 = vld [vmem:[%s1356] sm:$0xff]
                %1359 = vst [vmem:[%s1357] sm:$0xff] %v1358
                %s1360 = sadd.s32 1, %s1355
                %p1361 = scmp.ge.s32.totalorder %s1360, %s1343
                %s1362 = scalar_select %p1361, 0, %s1360
                %s1363 = smul.u32 %s1362, 8
                %s1364 = smul.u32 %s1362, 8
                %s1365 = scalar_lea.vmem %s1346, %s1363 [#allocation2]
                %s1366 = scalar_lea.vmem %s1348, %s1364
              $region68: #{module_forward.1} parent=55 // loop_footer
                %s1352 = sadd.s32 %s1350, 1
              $region69: #{module_forward.1} parent=55 // loop_footer_branch
                %1349 = sbr.rel target = $region65
              $region70: #{module_forward.1} parent=55 // loop_exit
                _
            $region56: #{module_forward.1} parent=47 // pred_fallthru
              _
          $region48: #{module_forward.1} parent=43 // pred_fallthru
            _
          %1429 = vnop
        $region44: #{module_forward.1} parent=39 // pred_fallthru
          _
      $region40: #{module_forward.1} parent=5 // pred_fallthru
        _
      %p1430 = scmp.le.s32.totalorder 2, %s11
      // Predicated region
      $region93: #{module_forward.1} parent=5 // pred_check
        %p1431 = pneg %p1430
      $region94: #{module_forward.1} parent=5 // pred_check_branch
        %1433 = sbr.rel (%p1431) target = $region96
      $region95: #{module_forward.1} parent=5 // pred_region
        %s1434 = ssub.s32 %s11, 2
        // Predicated region
        $region97: #{module_forward.1} parent=95 // pred_check
          %p1435 = pneg %p150
        $region98: #{module_forward.1} parent=95 // pred_check_branch
          %1437 = sbr.rel (%p1435) target = $region100
        $region99: #{module_forward.1} parent=95 // pred_region
          %s1438 = sand.u32 %s135, 1
          %s1439 = sand.u32 %s135, 1
          %s1440 = smul.addr %s1439, 64
          %s1441 = scalar_lea.vmem [#allocation2], %s1440
        $region100: #{module_forward.1} parent=95 // pred_fallthru
          _
      $region96: #{module_forward.1} parent=5 // pred_fallthru
        _
    $region6: #{module_forward.1} parent=1 // loop_footer
      %s15 = sadd.s32 1, %s11
    $region7: #{module_forward.1} parent=1 // loop_footer_branch
      %10 = sbr.rel target = $region3
    $region8: #{module_forward.1} parent=1 // loop_exit
      _

</llo_original>
